<compile_context>
chip_gen: v6e
topology: v6e:2x2x1
jax: 0.10.0
libtpu: 0.0.40
codegen_flags: <defaults>
</compile_context>

<pallas_src>
import functools

import jax
import jax.numpy as jnp
from jax.experimental import pallas as pl
from jax.experimental.pallas import tpu as pltpu

_LANE = 128
_MAX_TILE_ROWS = 4096  # 4096x128 f32 = 2 MiB/input/buffer -> 8 MiB double-buffered


def _sublane_align(dtype):
    # Block second-minor dim must respect packed-sublane tiling of the input.
    return {4: 8, 2: 16, 1: 32}.get(jnp.dtype(dtype).itemsize, 8)


def _choose_tile(rows_arr, align, max_rows=_MAX_TILE_ROWS):
    """Pick tile_r (multiple of `align`, <= rows_arr, <= max_rows) and num_tiles.

    Mild preference for an exact divisor of rows_arr (no partial last block ->
    no in-kernel masking), but never at the cost of much smaller tiles.
    """
    cap = min(max_rows, (rows_arr // align) * align)
    for cand in range(cap, max(align, (3 * cap) // 4) - 1, -align):
        if rows_arr % cand == 0:
            return cand, rows_arr // cand
    return cap, -(-rows_arr // cap)


def _bce_dice_partial_kernel(pred_ref, gt_ref,
                             bce_ref, inter_ref, psum_ref, gsum_ref,
                             acc_ref,
                             *, valid_rows, tile_r, needs_mask, hard_labels):
    t = pl.program_id(1)
    nt = pl.num_programs(1)

    @pl.when(t == 0)
    def _():
        acc_ref[...] = jnp.zeros_like(acc_ref)

    p = pred_ref[...].astype(jnp.float32)   # (1, tile_r, 128)
    g = gt_ref[...].astype(jnp.float32)

    if needs_mask:
        # Rows past `valid_rows` in the (partial) last block are undefined in
        # VMEM; zero p and g there so every statistic gets an exact 0
        # contribution (and no NaN from log(garbage) can leak in).
        bound = valid_rows - t * tile_r       # >= tile_r except on the last tile
        row_idx = jax.lax.broadcasted_iota(jnp.int32, p.shape, 1)
        in_bounds = row_idx < bound
        p = jnp.where(in_bounds, p, 0.0)
        g = jnp.where(in_bounds, g, 0.0)

    if hard_labels:
        # One transcendental per element (valid only for g in {0, 1}).
        sel = jnp.where(g > 0.5, p, 1.0 - p)
        bce_elem = -jnp.maximum(jnp.log(sel), -100.0)
    else:
        # F.binary_cross_entropy semantics (soft labels OK): clamp log terms at
        # -100; refactored -(g*log p + (1-g)*log(1-p)) -> one multiply/element.
        log_p = jnp.maximum(jnp.log(p), -100.0)
        log_1mp = jnp.maximum(jnp.log1p(-p), -100.0)
        bce_elem = -(g * (log_p - log_1mp) + log_1mp)

    k = tile_r // 8

    def lanewise(x):
        # (1, tile_r, 128) -> (8, 128) partial sums: tile-aligned regroup plus
        # pure VPU vreg adds; no per-tile XLU tree reduction, no scalar RMW.
        return jnp.sum(x.reshape(k, 8, _LANE), axis=0)

    acc_ref[0] += lanewise(bce_elem)
    acc_ref[1] += lanewise(p * g)
    acc_ref[2] += lanewise(p)
    acc_ref[3] += lanewise(g)

    @pl.when(t == nt - 1)
    def _():
        def total(i):
            return jnp.sum(acc_ref[i].reshape(1, 8, _LANE),
                           axis=(1, 2), keepdims=True)
        bce_ref[...] = total(0)
        inter_ref[...] = total(1)
        psum_ref[...] = total(2)
        gsum_ref[...] = total(3)


def bce_dice_loss(pred, gt, bce_weight=0.5, smooth=1e-10, hard_labels=False):
    """pred, gt: (B, C, H, W); pred in (0, 1), gt in [0, 1] (or {0,1})."""
    B, C, H, W = pred.shape
    n = C * H * W

    align = max(_sublane_align(pred.dtype), _sublane_align(gt.dtype))
    rows = -(-n // _LANE)                 # rows of real data
    rows_arr = max(rows, align)           # array rows (tiny-input fallback)
    tile_r, num_tiles = _choose_tile(rows_arr, align)
    needs_mask = num_tiles * tile_r > rows_arr

    def _prep(x):
        x2 = x.reshape(B, n)               # native dtype; cast happens in-kernel
        pad = rows_arr * _LANE - n
        if pad:                            # only when n % 128 != 0 (or n tiny)
            x2 = jnp.pad(x2, ((0, 0), (0, pad)))   # zeros contribute exactly 0
        return x2.reshape(B, rows_arr, _LANE)

    p3 = _prep(pred)
    g3 = _prep(gt)

    out_sds = jax.ShapeDtypeStruct((B, 1, 1), jnp.float32)
    in_spec = pl.BlockSpec((1, tile_r, _LANE), lambda b, t: (b, t, 0))
    out_spec = pl.BlockSpec((1, 1, 1), lambda b, t: (b, 0, 0))

    kernel = functools.partial(
        _bce_dice_partial_kernel,
        valid_rows=rows_arr, tile_r=tile_r,
        needs_mask=needs_mask, hard_labels=hard_labels)

    elems = B * rows_arr * _LANE
    cost = pl.CostEstimate(
        flops=10 * elems,
        transcendentals=(1 if hard_labels else 2) * elems,
        bytes_accessed=elems * (p3.dtype.itemsize + g3.dtype.itemsize) + 16 * B)

    bce_sum, inter, p_sum, g_sum = pl.pallas_call(
        kernel,
        out_shape=(out_sds, out_sds, out_sds, out_sds),
        grid_spec=pltpu.PrefetchScalarGridSpec(
            num_scalar_prefetch=0,
            grid=(B, num_tiles),
            in_specs=[in_spec, in_spec],
            out_specs=[out_spec, out_spec, out_spec, out_spec],
            scratch_shapes=[pltpu.VMEM((4, 8, _LANE), jnp.float32)],
        ),
        compiler_params=pltpu.CompilerParams(
            # batch axis independent (megacore on v7x); row-tile axis is the
            # reduction axis with resident per-sample accumulators.
            dimension_semantics=("parallel", "arbitrary"),
            vmem_limit_bytes=48 * 1024 * 1024,   # headroom, still v7x-safe
        ),
        cost_estimate=cost,
    )(p3, g3)

    bce_sum = bce_sum.reshape(B)
    inter = inter.reshape(B)
    union = p_sum.reshape(B) + g_sum.reshape(B)

    # Tiny scalar epilogue in plain JAX.
    bce_loss = jnp.sum(bce_sum) / jnp.float32(B * n)
    dice = 1.0 - (2.0 * inter + smooth) / (union + smooth)
    return bce_weight * bce_loss + (1.0 - bce_weight) * jnp.mean(dice)


def _reference(pred, gt, bce_weight=0.5, smooth=1e-10):
    p = pred.astype(jnp.float32)
    g = gt.astype(jnp.float32)
    log_p = jnp.maximum(jnp.log(p), -100.0)
    log_1mp = jnp.maximum(jnp.log1p(-p), -100.0)
    bce = jnp.mean(-(g * log_p + (1.0 - g) * log_1mp))
    inter = jnp.sum(p * g, axis=(1, 2, 3))
    union = jnp.sum(p, axis=(1, 2, 3)) + jnp.sum(g, axis=(1, 2, 3))
    dice = 1.0 - (2.0 * inter + smooth) / (union + smooth)
    return bce_weight * bce + (1.0 - bce_weight) * jnp.mean(dice)


if __name__ == "__main__":
    key = jax.random.PRNGKey(0)
    k1, k2 = jax.random.split(key)

    B, C, H, W = 2, 4, 16, 16
    # pred = probabilities in (0, 1); gt = binary mask (soft labels also work).
    pred = jax.nn.sigmoid(jax.random.normal(k1, (B, C, H, W), dtype=jnp.float32))
    gt = (jax.random.uniform(k2, (B, C, H, W)) > 0.5).astype(jnp.float32)

    loss = bce_dice_loss(pred, gt)
    loss = jax.block_until_ready(loss)

    ref = _reference(pred, gt)
    assert jnp.allclose(loss, ref, rtol=1e-5, atol=1e-5), (loss, ref)

    print("KERNEL_OK")
</pallas_src>

<mosaic_0001>
module attributes {stable_mosaic.version = 11 : i64} {
  func.func @_bce_dice_partial_kernel(%arg0: i32, %arg1: i32, %arg2: memref<1x8x128xf32, #tpu.memory_space<vmem>>, %arg3: memref<1x8x128xf32, #tpu.memory_space<vmem>>, %arg4: memref<1x1x1xf32, #tpu.memory_space<vmem>>, %arg5: memref<1x1x1xf32, #tpu.memory_space<vmem>>, %arg6: memref<1x1x1xf32, #tpu.memory_space<vmem>>, %arg7: memref<1x1x1xf32, #tpu.memory_space<vmem>>, %arg8: memref<4x8x128xf32, #tpu.memory_space<vmem>>) attributes {dimension_semantics = [#tpu.dimension_semantics<parallel>, #tpu.dimension_semantics<arbitrary>], iteration_bounds = array<i64: 2, 1>, scalar_prefetch = 0 : i64, scratch_operands = 1 : i64, tpu.core_type = #tpu.core_type<tc>, window_params = [{transform_indices = @transform_0, window_bounds = array<i64: 1, 8, 128>}, {transform_indices = @transform_1, window_bounds = array<i64: 1, 8, 128>}, {transform_indices = @transform_2, window_bounds = array<i64: 1, 1, 1>}, {transform_indices = @transform_3, window_bounds = array<i64: 1, 1, 1>}, {transform_indices = @transform_4, window_bounds = array<i64: 1, 1, 1>}, {transform_indices = @transform_5, window_bounds = array<i64: 1, 1, 1>}]} {
    %c0_i32 = arith.constant 0 : i32
    %0 = arith.cmpi eq, %arg1, %c0_i32 : i32
    %1 = arith.extui %0 : i1 to i32
    %c0_i32_0 = arith.constant 0 : i32
    %2 = arith.cmpi ne, %1, %c0_i32_0 : i32
    scf.if %2 {
      %cst_36 = arith.constant 0.000000e+00 : f32
      %50 = vector.broadcast %cst_36 : f32 to vector<4x8x128xf32>
      %c0_37 = arith.constant 0 : index
      %c0_38 = arith.constant 0 : index
      %c0_39 = arith.constant 0 : index
      %51 = vector.load %arg8[%c0_37, %c0_38, %c0_39] : memref<4x8x128xf32, #tpu.memory_space<vmem>>, vector<4x8x128xf32>
      tpu.vector_store %arg8[%c0_37, %c0_38, %c0_39], %50 {strides = array<i32>} : memref<4x8x128xf32, #tpu.memory_space<vmem>>, vector<4x8x128xf32>,
    } else {
    }
    %c0 = arith.constant 0 : index
    %c0_1 = arith.constant 0 : index
    %c0_2 = arith.constant 0 : index
    %3 = vector.load %arg2[%c0, %c0_1, %c0_2] : memref<1x8x128xf32, #tpu.memory_space<vmem>>, vector<1x8x128xf32>
    %c0_3 = arith.constant 0 : index
    %c0_4 = arith.constant 0 : index
    %c0_5 = arith.constant 0 : index
    %4 = vector.load %arg3[%c0_3, %c0_4, %c0_5] : memref<1x8x128xf32, #tpu.memory_space<vmem>>, vector<1x8x128xf32>
    %5 = math.log %3 : vector<1x8x128xf32>
    %cst = arith.constant -1.000000e+02 : f32
    %6 = vector.broadcast %cst : f32 to vector<1x8x128xf32>
    %7 = arith.maximumf %5, %6 : vector<1x8x128xf32>
    %cst_6 = arith.constant 0.000000e+00 : f32
    %8 = vector.broadcast %cst_6 : f32 to vector<1x8x128xf32>
    %9 = arith.subf %8, %3 : vector<1x8x128xf32>
    %10 = math.log1p %9 : vector<1x8x128xf32>
    %cst_7 = arith.constant -1.000000e+02 : f32
    %11 = vector.broadcast %cst_7 : f32 to vector<1x8x128xf32>
    %12 = arith.maximumf %10, %11 : vector<1x8x128xf32>
    %13 = arith.subf %7, %12 : vector<1x8x128xf32>
    %14 = arith.mulf %4, %13 : vector<1x8x128xf32>
    %15 = arith.addf %14, %12 : vector<1x8x128xf32>
    %cst_8 = arith.constant 0.000000e+00 : f32
    %16 = vector.broadcast %cst_8 : f32 to vector<1x8x128xf32>
    %17 = arith.subf %16, %15 : vector<1x8x128xf32>
    %c0_9 = arith.constant 0 : index
    %c0_10 = arith.constant 0 : index
    %c0_11 = arith.constant 0 : index
    %18 = vector.load %arg8[%c0_9, %c0_10, %c0_11] : memref<4x8x128xf32, #tpu.memory_space<vmem>>, vector<1x8x128xf32>
    %19 = vector.shape_cast %18 : vector<1x8x128xf32> to vector<8x128xf32>
    %cst_12 = arith.constant dense<0.000000e+00> : vector<8x128xf32>
    %20 = vector.multi_reduction <add>, %17, %cst_12 [0] : vector<1x8x128xf32> to vector<8x128xf32>
    %21 = arith.addf %19, %20 : vector<8x128xf32>
    %c0_13 = arith.constant 0 : index
    %c0_14 = arith.constant 0 : index
    %c0_15 = arith.constant 0 : index
    %22 = vector.load %arg8[%c0_13, %c0_14, %c0_15] : memref<4x8x128xf32, #tpu.memory_space<vmem>>, vector<1x8x128xf32>
    %23 = vector.shape_cast %22 : vector<1x8x128xf32> to vector<8x128xf32>
    %24 = vector.shape_cast %21 : vector<8x128xf32> to vector<1x8x128xf32>
    tpu.vector_store %arg8[%c0_13, %c0_14, %c0_15], %24 {strides = array<i32>} : memref<4x8x128xf32, #tpu.memory_space<vmem>>, vector<1x8x128xf32>,
    %c1 = arith.constant 1 : index
    %c0_16 = arith.constant 0 : index
    %c0_17 = arith.constant 0 : index
    %25 = vector.load %arg8[%c1, %c0_16, %c0_17] : memref<4x8x128xf32, #tpu.memory_space<vmem>>, vector<1x8x128xf32>
    %26 = vector.shape_cast %25 : vector<1x8x128xf32> to vector<8x128xf32>
    %27 = arith.mulf %3, %4 : vector<1x8x128xf32>
    %cst_18 = arith.constant dense<0.000000e+00> : vector<8x128xf32>
    %28 = vector.multi_reduction <add>, %27, %cst_18 [0] : vector<1x8x128xf32> to vector<8x128xf32>
    %29 = arith.addf %26, %28 : vector<8x128xf32>
    %c1_19 = arith.constant 1 : index
    %c0_20 = arith.constant 0 : index
    %c0_21 = arith.constant 0 : index
    %30 = vector.load %arg8[%c1_19, %c0_20, %c0_21] : memref<4x8x128xf32, #tpu.memory_space<vmem>>, vector<1x8x128xf32>
    %31 = vector.shape_cast %30 : vector<1x8x128xf32> to vector<8x128xf32>
    %32 = vector.shape_cast %29 : vector<8x128xf32> to vector<1x8x128xf32>
    tpu.vector_store %arg8[%c1_19, %c0_20, %c0_21], %32 {strides = array<i32>} : memref<4x8x128xf32, #tpu.memory_space<vmem>>, vector<1x8x128xf32>,
    %c2 = arith.constant 2 : index
    %c0_22 = arith.constant 0 : index
    %c0_23 = arith.constant 0 : index
    %33 = vector.load %arg8[%c2, %c0_22, %c0_23] : memref<4x8x128xf32, #tpu.memory_space<vmem>>, vector<1x8x128xf32>
    %34 = vector.shape_cast %33 : vector<1x8x128xf32> to vector<8x128xf32>
    %cst_24 = arith.constant dense<0.000000e+00> : vector<8x128xf32>
    %35 = vector.multi_reduction <add>, %3, %cst_24 [0] : vector<1x8x128xf32> to vector<8x128xf32>
    %36 = arith.addf %34, %35 : vector<8x128xf32>
    %c2_25 = arith.constant 2 : index
    %c0_26 = arith.constant 0 : index
    %c0_27 = arith.constant 0 : index
    %37 = vector.load %arg8[%c2_25, %c0_26, %c0_27] : memref<4x8x128xf32, #tpu.memory_space<vmem>>, vector<1x8x128xf32>
    %38 = vector.shape_cast %37 : vector<1x8x128xf32> to vector<8x128xf32>
    %39 = vector.shape_cast %36 : vector<8x128xf32> to vector<1x8x128xf32>
    tpu.vector_store %arg8[%c2_25, %c0_26, %c0_27], %39 {strides = array<i32>} : memref<4x8x128xf32, #tpu.memory_space<vmem>>, vector<1x8x128xf32>,
    %c3 = arith.constant 3 : index
    %c0_28 = arith.constant 0 : index
    %c0_29 = arith.constant 0 : index
    %40 = vector.load %arg8[%c3, %c0_28, %c0_29] : memref<4x8x128xf32, #tpu.memory_space<vmem>>, vector<1x8x128xf32>
    %41 = vector.shape_cast %40 : vector<1x8x128xf32> to vector<8x128xf32>
    %cst_30 = arith.constant dense<0.000000e+00> : vector<8x128xf32>
    %42 = vector.multi_reduction <add>, %4, %cst_30 [0] : vector<1x8x128xf32> to vector<8x128xf32>
    %43 = arith.addf %41, %42 : vector<8x128xf32>
    %c3_31 = arith.constant 3 : index
    %c0_32 = arith.constant 0 : index
    %c0_33 = arith.constant 0 : index
    %44 = vector.load %arg8[%c3_31, %c0_32, %c0_33] : memref<4x8x128xf32, #tpu.memory_space<vmem>>, vector<1x8x128xf32>
    %45 = vector.shape_cast %44 : vector<1x8x128xf32> to vector<8x128xf32>
    %46 = vector.shape_cast %43 : vector<8x128xf32> to vector<1x8x128xf32>
    tpu.vector_store %arg8[%c3_31, %c0_32, %c0_33], %46 {strides = array<i32>} : memref<4x8x128xf32, #tpu.memory_space<vmem>>, vector<1x8x128xf32>,
    %c0_i32_34 = arith.constant 0 : i32
    %47 = arith.cmpi eq, %arg1, %c0_i32_34 : i32
    %48 = arith.extui %47 : i1 to i32
    %c0_i32_35 = arith.constant 0 : i32
    %49 = arith.cmpi ne, %48, %c0_i32_35 : i32
    scf.if %49 {
      %c0_36 = arith.constant 0 : index
      %c0_37 = arith.constant 0 : index
      %c0_38 = arith.constant 0 : index
      %50 = vector.load %arg8[%c0_36, %c0_37, %c0_38] : memref<4x8x128xf32, #tpu.memory_space<vmem>>, vector<1x8x128xf32>
      %51 = vector.shape_cast %50 : vector<1x8x128xf32> to vector<8x128xf32>
      %52 = vector.shape_cast %51 : vector<8x128xf32> to vector<1x8x128xf32>
      %cst_39 = arith.constant dense<0.000000e+00> : vector<1xf32>
      %53 = vector.multi_reduction <add>, %52, %cst_39 [1, 2] : vector<1x8x128xf32> to vector<1xf32>
      %54 = vector.shape_cast %53 : vector<1xf32> to vector<1x1x1xf32>
      %c0_40 = arith.constant 0 : index
      %c0_41 = arith.constant 0 : index
      %c0_42 = arith.constant 0 : index
      %55 = vector.load %arg4[%c0_40, %c0_41, %c0_42] : memref<1x1x1xf32, #tpu.memory_space<vmem>>, vector<1x1x1xf32>
      tpu.vector_store %arg4[%c0_40, %c0_41, %c0_42], %54 {strides = array<i32>} : memref<1x1x1xf32, #tpu.memory_space<vmem>>, vector<1x1x1xf32>,
      %c1_43 = arith.constant 1 : index
      %c0_44 = arith.constant 0 : index
      %c0_45 = arith.constant 0 : index
      %56 = vector.load %arg8[%c1_43, %c0_44, %c0_45] : memref<4x8x128xf32, #tpu.memory_space<vmem>>, vector<1x8x128xf32>
      %57 = vector.shape_cast %56 : vector<1x8x128xf32> to vector<8x128xf32>
      %58 = vector.shape_cast %57 : vector<8x128xf32> to vector<1x8x128xf32>
      %cst_46 = arith.constant dense<0.000000e+00> : vector<1xf32>
      %59 = vector.multi_reduction <add>, %58, %cst_46 [1, 2] : vector<1x8x128xf32> to vector<1xf32>
      %60 = vector.shape_cast %59 : vector<1xf32> to vector<1x1x1xf32>
      %c0_47 = arith.constant 0 : index
      %c0_48 = arith.constant 0 : index
      %c0_49 = arith.constant 0 : index
      %61 = vector.load %arg5[%c0_47, %c0_48, %c0_49] : memref<1x1x1xf32, #tpu.memory_space<vmem>>, vector<1x1x1xf32>
      tpu.vector_store %arg5[%c0_47, %c0_48, %c0_49], %60 {strides = array<i32>} : memref<1x1x1xf32, #tpu.memory_space<vmem>>, vector<1x1x1xf32>,
      %c2_50 = arith.constant 2 : index
      %c0_51 = arith.constant 0 : index
      %c0_52 = arith.constant 0 : index
      %62 = vector.load %arg8[%c2_50, %c0_51, %c0_52] : memref<4x8x128xf32, #tpu.memory_space<vmem>>, vector<1x8x128xf32>
      %63 = vector.shape_cast %62 : vector<1x8x128xf32> to vector<8x128xf32>
      %64 = vector.shape_cast %63 : vector<8x128xf32> to vector<1x8x128xf32>
      %cst_53 = arith.constant dense<0.000000e+00> : vector<1xf32>
      %65 = vector.multi_reduction <add>, %64, %cst_53 [1, 2] : vector<1x8x128xf32> to vector<1xf32>
      %66 = vector.shape_cast %65 : vector<1xf32> to vector<1x1x1xf32>
      %c0_54 = arith.constant 0 : index
      %c0_55 = arith.constant 0 : index
      %c0_56 = arith.constant 0 : index
      %67 = vector.load %arg6[%c0_54, %c0_55, %c0_56] : memref<1x1x1xf32, #tpu.memory_space<vmem>>, vector<1x1x1xf32>
      tpu.vector_store %arg6[%c0_54, %c0_55, %c0_56], %66 {strides = array<i32>} : memref<1x1x1xf32, #tpu.memory_space<vmem>>, vector<1x1x1xf32>,
      %c3_57 = arith.constant 3 : index
      %c0_58 = arith.constant 0 : index
      %c0_59 = arith.constant 0 : index
      %68 = vector.load %arg8[%c3_57, %c0_58, %c0_59] : memref<4x8x128xf32, #tpu.memory_space<vmem>>, vector<1x8x128xf32>
      %69 = vector.shape_cast %68 : vector<1x8x128xf32> to vector<8x128xf32>
      %70 = vector.shape_cast %69 : vector<8x128xf32> to vector<1x8x128xf32>
      %cst_60 = arith.constant dense<0.000000e+00> : vector<1xf32>
      %71 = vector.multi_reduction <add>, %70, %cst_60 [1, 2] : vector<1x8x128xf32> to vector<1xf32>
      %72 = vector.shape_cast %71 : vector<1xf32> to vector<1x1x1xf32>
      %c0_61 = arith.constant 0 : index
      %c0_62 = arith.constant 0 : index
      %c0_63 = arith.constant 0 : index
      %73 = vector.load %arg7[%c0_61, %c0_62, %c0_63] : memref<1x1x1xf32, #tpu.memory_space<vmem>>, vector<1x1x1xf32>
      tpu.vector_store %arg7[%c0_61, %c0_62, %c0_63], %72 {strides = array<i32>} : memref<1x1x1xf32, #tpu.memory_space<vmem>>, vector<1x1x1xf32>,
    } else {
    }
    return
  }
  func.func @transform_0(%arg0: i32, %arg1: i32) -> (i32, i32, i32) {
    %c0_i32 = arith.constant 0 : i32
    %c0_i32_0 = arith.constant 0 : i32
    return %arg0, %arg1, %c0_i32 : i32, i32, i32
  }
  func.func @transform_1(%arg0: i32, %arg1: i32) -> (i32, i32, i32) {
    %c0_i32 = arith.constant 0 : i32
    %c0_i32_0 = arith.constant 0 : i32
    return %arg0, %arg1, %c0_i32 : i32, i32, i32
  }
  func.func @transform_2(%arg0: i32, %arg1: i32) -> (i32, i32, i32) {
    %c0_i32 = arith.constant 0 : i32
    %c0_i32_0 = arith.constant 0 : i32
    %c0_i32_1 = arith.constant 0 : i32
    return %arg0, %c0_i32, %c0_i32_0 : i32, i32, i32
  }
  func.func @transform_3(%arg0: i32, %arg1: i32) -> (i32, i32, i32) {
    %c0_i32 = arith.constant 0 : i32
    %c0_i32_0 = arith.constant 0 : i32
    %c0_i32_1 = arith.constant 0 : i32
    return %arg0, %c0_i32, %c0_i32_0 : i32, i32, i32
  }
  func.func @transform_4(%arg0: i32, %arg1: i32) -> (i32, i32, i32) {
    %c0_i32 = arith.constant 0 : i32
    %c0_i32_0 = arith.constant 0 : i32
    %c0_i32_1 = arith.constant 0 : i32
    return %arg0, %c0_i32, %c0_i32_0 : i32, i32, i32
  }
  func.func @transform_5(%arg0: i32, %arg1: i32) -> (i32, i32, i32) {
    %c0_i32 = arith.constant 0 : i32
    %c0_i32_0 = arith.constant 0 : i32
    %c0_i32_1 = arith.constant 0 : i32
    return %arg0, %c0_i32, %c0_i32_0 : i32, i32, i32
  }
}

</mosaic_0001>

<llo_original>
// kernel: tpu_custom_call.1
$region0: #{tpu_custom_call.1}
  #allocation0 [shape = 'u32[]', space=smem, size = 0x4, offset = 0x4, fixed_abs, tag = 'smem constant byte address 0x4 - core index']
  #allocation1 [shape = 'u32[144,128]{1,0:T(1,128)}', space=vmem, size = 0x12000, scoped, tag = 'internal scratch']
  #allocation2 [shape = 'f32[4,8,128]{2,1,0:T(8,128)}', space=vmem, size = 0x4000, scoped, tag = 'scratch operand']
  %s0 = inlined_call_operand.hbm [shape: f32[2,8,128], index: 0, kind: input, shape index: {}]
  %s1 = inlined_call_operand.hbm [shape: f32[2,8,128], index: 1, kind: input, shape index: {}]
  %s2 = inlined_call_operand.vmem [shape: f32[2,1,1], index: 2, kind: output, shape index: {0}]
  %s3 = inlined_call_operand.vmem [shape: f32[2,1,1], index: 3, kind: output, shape index: {1}]
  %s4 = inlined_call_operand.vmem [shape: f32[2,1,1], index: 4, kind: output, shape index: {2}]
  %s5 = inlined_call_operand.vmem [shape: f32[2,1,1], index: 5, kind: output, shape index: {3}]
  %6 = xla_tuple %s2, %s3, %s4, %s5
  %s7 = sld [smem:[#allocation0]]
  $region81: #{tpu_custom_call.1} parent=0
    _
  %s9 = ssub.s32 1, %s7
  %s10 = scalar_select 0, %s9, %s7
  $region1: #{tpu_custom_call.1} parent=0
    #allocation3 [shape = 'u8[8192]{0}', space=vmem, size = 0x2000, scoped, tag = 'input window, operand 0']
    #allocation4 [shape = 's32[2]{0}', space=sflag, size = 0x8, scoped, tag = 'scoped memory for tpu_custom_call.1']
    #allocation5 [shape = 'u8[8192]{0}', space=vmem, size = 0x2000, scoped, tag = 'input window, operand 1']
    #allocation6 [shape = 's32[2]{0}', space=sflag, size = 0x8, scoped, tag = 'scoped memory for tpu_custom_call.1']
    %11 = vsyncpa [#allocation4], 0
    %s12 = scalar_lea.sflag [#allocation4], 1
    %13 = vsyncpa %s12, 0
    %14 = vsyncpa [#allocation6], 0
    %s15 = scalar_lea.sflag [#allocation6], 1
    %16 = vsyncpa %s15, 0
    loop: start=0, step=1, limit=4
    $region2: #{tpu_custom_call.1} parent=1 // loop_pre_header
      _
    $region3: #{tpu_custom_call.1} parent=1 // loop_header
      %s18 = sphi 0, %s22
      %p19 = scmp.ge.s32.totalorder %s18, 4
      %s25 = sphi 0, %s37
      %s26 = sphi 0, %s33
      %s27 = sphi 0, %s25
      %s28 = sphi 0, %s26
      %s29 = sphi 0, %s27
      %s30 = sphi 0, %s28
      %s42 = sphi 0, %s44
      %s45 = sphi 0, %s42
      %s46 = sphi 0, %s45
      %s62 = sphi 0, %s46
      %s70 = sphi 0, %s72
      %s73 = sphi 0, %s70
      %s74 = sphi 0, %s73
      %s90 = sphi 0, %s74
      %s96 = sphi 0, %s98
      %s99 = sphi 0, %s96
      %s100 = sphi 0, %s99
      %s116 = sphi 0, %s100
      %s122 = sphi 0, %s124
      %s125 = sphi 0, %s122
      %s126 = sphi 0, %s125
      %s142 = sphi 0, %s126
      %s148 = sphi 0, %s150
      %s151 = sphi 0, %s148
      %s152 = sphi 0, %s151
      %s168 = sphi 0, %s152
      %s174 = sphi 0, %s176
      %s177 = sphi 0, %s174
      %s178 = sphi 0, %s177
      %s194 = sphi 0, %s178
    $region4: #{tpu_custom_call.1} parent=1 // loop_header_branch
      %21 = sbr.rel (%p19) target = $region8
    $region5: #{tpu_custom_call.1} parent=1 // loop_body
      %s23 = ssub.s32 %s18, 1
      %s24 = ssub.s32 %s18, 2
      %s31 = sadd.s32 1, %s26
      %p32 = scmp.ge.s32.totalorder %s31, 1
      %s33 = scalar_select %p32, 0, %s31
      %s34 = sadd.s32 1, %s25
      %s35 = scalar_select %p32, %s34, %s25
      %p36 = scmp.ge.s32.totalorder %s35, 2
      %s37 = scalar_select %p36, 0, %s35
      %s38 = ssub.s32 %s25, %s37
      %s39 = ssub.s32 %s26, %s33
      %s40 = sor.u32 %s38, %s39
      %p41 = scmp.eq.s32.totalorder %s40, 0
      %s43 = sadd.s32 %s42, 1
      %s44 = scalar_select %p41, %s42, %s43
      %p47 = pneg %p41
      %p48 = scmp.eq.s32.totalorder %s18, 1
      %p49 = por %p47, %p48
      %p50 = scmp.ne.s32.totalorder %s42, %s45
      %p51 = scmp.eq.s32.totalorder %s18, 0
      %p52 = por %p50, %p51
      %p53 = scmp.ne.s32.totalorder %s42, %s45
      %p54 = scmp.eq.s32.totalorder %s23, 1
      %p55 = por %p53, %p54
      %p56 = scmp.ne.s32.totalorder %s45, %s46
      %p57 = scmp.eq.s32.totalorder %s23, 0
      %p58 = por %p56, %p57
      %p59 = scmp.ne.s32.totalorder %s45, %s46
      %p60 = scmp.eq.s32.totalorder %s24, 1
      %p61 = por %p59, %p60
      %p63 = scmp.ne.s32.totalorder %s46, %s62
      %p64 = scmp.eq.s32.totalorder %s24, 0
      %p65 = por %p63, %p64
      %s66 = ssub.s32 %s25, %s37
      %s67 = ssub.s32 %s26, %s33
      %s68 = sor.u32 %s66, %s67
      %p69 = scmp.eq.s32.totalorder %s68, 0
      %s71 = sadd.s32 %s70, 1
      %s72 = scalar_select %p69, %s70, %s71
      %p75 = pneg %p69
      %p76 = scmp.eq.s32.totalorder %s18, 1
      %p77 = por %p75, %p76
      %p78 = scmp.ne.s32.totalorder %s70, %s73
      %p79 = scmp.eq.s32.totalorder %s18, 0
      %p80 = por %p78, %p79
      %p81 = scmp.ne.s32.totalorder %s70, %s73
      %p82 = scmp.eq.s32.totalorder %s23, 1
      %p83 = por %p81, %p82
      %p84 = scmp.ne.s32.totalorder %s73, %s74
      %p85 = scmp.eq.s32.totalorder %s23, 0
      %p86 = por %p84, %p85
      %p87 = scmp.ne.s32.totalorder %s73, %s74
      %p88 = scmp.eq.s32.totalorder %s24, 1
      %p89 = por %p87, %p88
      %p91 = scmp.ne.s32.totalorder %s74, %s90
      %p92 = scmp.eq.s32.totalorder %s24, 0
      %p93 = por %p91, %p92
      %s94 = ssub.s32 %s25, %s37
      %p95 = scmp.eq.s32.totalorder %s94, 0
      %s97 = sadd.s32 %s96, 1
      %s98 = scalar_select %p95, %s96, %s97
      %p101 = pneg %p95
      %p102 = scmp.eq.s32.totalorder %s18, 1
      %p103 = por %p101, %p102
      %p104 = scmp.ne.s32.totalorder %s96, %s99
      %p105 = scmp.eq.s32.totalorder %s18, 0
      %p106 = por %p104, %p105
      %p107 = scmp.ne.s32.totalorder %s96, %s99
      %p108 = scmp.eq.s32.totalorder %s23, 1
      %p109 = por %p107, %p108
      %p110 = scmp.ne.s32.totalorder %s99, %s100
      %p111 = scmp.eq.s32.totalorder %s23, 0
      %p112 = por %p110, %p111
      %p113 = scmp.ne.s32.totalorder %s99, %s100
      %p114 = scmp.eq.s32.totalorder %s24, 1
      %p115 = por %p113, %p114
      %p117 = scmp.ne.s32.totalorder %s100, %s116
      %p118 = scmp.eq.s32.totalorder %s24, 0
      %p119 = por %p117, %p118
      %s120 = ssub.s32 %s25, %s37
      %p121 = scmp.eq.s32.totalorder %s120, 0
      %s123 = sadd.s32 %s122, 1
      %s124 = scalar_select %p121, %s122, %s123
      %p127 = pneg %p121
      %p128 = scmp.eq.s32.totalorder %s18, 1
      %p129 = por %p127, %p128
      %p130 = scmp.ne.s32.totalorder %s122, %s125
      %p131 = scmp.eq.s32.totalorder %s18, 0
      %p132 = por %p130, %p131
      %p133 = scmp.ne.s32.totalorder %s122, %s125
      %p134 = scmp.eq.s32.totalorder %s23, 1
      %p135 = por %p133, %p134
      %p136 = scmp.ne.s32.totalorder %s125, %s126
      %p137 = scmp.eq.s32.totalorder %s23, 0
      %p138 = por %p136, %p137
      %p139 = scmp.ne.s32.totalorder %s125, %s126
      %p140 = scmp.eq.s32.totalorder %s24, 1
      %p141 = por %p139, %p140
      %p143 = scmp.ne.s32.totalorder %s126, %s142
      %p144 = scmp.eq.s32.totalorder %s24, 0
      %p145 = por %p143, %p144
      %s146 = ssub.s32 %s25, %s37
      %p147 = scmp.eq.s32.totalorder %s146, 0
      %s149 = sadd.s32 %s148, 1
      %s150 = scalar_select %p147, %s148, %s149
      %p153 = pneg %p147
      %p154 = scmp.eq.s32.totalorder %s18, 1
      %p155 = por %p153, %p154
      %p156 = scmp.ne.s32.totalorder %s148, %s151
      %p157 = scmp.eq.s32.totalorder %s18, 0
      %p158 = por %p156, %p157
      %p159 = scmp.ne.s32.totalorder %s148, %s151
      %p160 = scmp.eq.s32.totalorder %s23, 1
      %p161 = por %p159, %p160
      %p162 = scmp.ne.s32.totalorder %s151, %s152
      %p163 = scmp.eq.s32.totalorder %s23, 0
      %p164 = por %p162, %p163
      %p165 = scmp.ne.s32.totalorder %s151, %s152
      %p166 = scmp.eq.s32.totalorder %s24, 1
      %p167 = por %p165, %p166
      %p169 = scmp.ne.s32.totalorder %s152, %s168
      %p170 = scmp.eq.s32.totalorder %s24, 0
      %p171 = por %p169, %p170
      %s172 = ssub.s32 %s25, %s37
      %p173 = scmp.eq.s32.totalorder %s172, 0
      %s175 = sadd.s32 %s174, 1
      %s176 = scalar_select %p173, %s174, %s175
      %p179 = pneg %p173
      %p180 = scmp.eq.s32.totalorder %s18, 1
      %p181 = por %p179, %p180
      %p182 = scmp.ne.s32.totalorder %s174, %s177
      %p183 = scmp.eq.s32.totalorder %s18, 0
      %p184 = por %p182, %p183
      %p185 = scmp.ne.s32.totalorder %s174, %s177
      %p186 = scmp.eq.s32.totalorder %s23, 1
      %p187 = por %p185, %p186
      %p188 = scmp.ne.s32.totalorder %s177, %s178
      %p189 = scmp.eq.s32.totalorder %s23, 0
      %p190 = por %p188, %p189
      %p191 = scmp.ne.s32.totalorder %s177, %s178
      %p192 = scmp.eq.s32.totalorder %s24, 1
      %p193 = por %p191, %p192
      %p195 = scmp.ne.s32.totalorder %s178, %s194
      %p196 = scmp.eq.s32.totalorder %s24, 0
      %p197 = por %p195, %p196
      %p198 = scmp.le.s32.totalorder 1, %s18
      %p199 = scmp.lt.s32.totalorder %s18, 3
      %p200 = pnand %p198, %p199
      %p201 = pneg %p200
      // Predicated region
      $region9: #{tpu_custom_call.1} parent=5 // pred_check
        _
      $region10: #{tpu_custom_call.1} parent=5 // pred_check_branch
        %203 = sbr.rel (%p200) target = $region12
      $region11: #{tpu_custom_call.1} parent=5 // pred_region
        %s204 = ssub.s32 %s18, 1
      $region12: #{tpu_custom_call.1} parent=5 // pred_fallthru
        _
      %p205 = scmp.lt.s32.totalorder %s18, 2
      // Predicated region
      $region13: #{tpu_custom_call.1} parent=5 // pred_check
        %p206 = pneg %p205
      $region14: #{tpu_custom_call.1} parent=5 // pred_check_branch
        %208 = sbr.rel (%p206) target = $region16
      $region15: #{tpu_custom_call.1} parent=5 // pred_region
        // Predicated region
        $region17: #{tpu_custom_call.1} parent=15 // pred_check
          %p209 = pneg %p52
        $region18: #{tpu_custom_call.1} parent=15 // pred_check_branch
          %211 = sbr.rel (%p209) target = $region20
        $region19: #{tpu_custom_call.1} parent=15 // pred_region
          %s212 = sand.u32 %s42, 1
          %s213 = scalar_lea.sflag [#allocation4], %s212
          %s214 = sand.u32 %s42, 1
          %s215 = smul.addr %s214, 8
          %s216 = scalar_lea.vmem [#allocation3], %s215
          %s218 = ssub.s32 128, 128
          %219 = vsyncadd %s213, %s218
          %s220 = sadd.s32 %s26, %s25
          %s221 = smul.addr %s220, 128
          %s222 = scalar_lea.hbm %s0, %s221
          %s224 = sshll.u32 %s216, 4
          %s225 = int_to_ptr.vmem [resolvable:$true] %s224
          %227 = dma.hbm_to_vmem [thread:$0]  %s222, 128, %s225, %s213
        $region20: #{tpu_custom_call.1} parent=15 // pred_fallthru
          _
        // Predicated region
        $region21: #{tpu_custom_call.1} parent=15 // pred_check
          %p228 = pneg %p80
        $region22: #{tpu_custom_call.1} parent=15 // pred_check_branch
          %230 = sbr.rel (%p228) target = $region24
        $region23: #{tpu_custom_call.1} parent=15 // pred_region
          %s231 = sand.u32 %s70, 1
          %s232 = scalar_lea.sflag [#allocation6], %s231
          %s233 = sand.u32 %s70, 1
          %s234 = smul.addr %s233, 8
          %s235 = scalar_lea.vmem [#allocation5], %s234
          %s237 = ssub.s32 128, 128
          %238 = vsyncadd %s232, %s237
          %s239 = sadd.s32 %s26, %s25
          %s240 = smul.addr %s239, 128
          %s241 = scalar_lea.hbm %s1, %s240
          %s243 = sshll.u32 %s235, 4
          %s244 = int_to_ptr.vmem [resolvable:$true] %s243
          %246 = dma.hbm_to_vmem [thread:$0]  %s241, 128, %s244, %s232
        $region24: #{tpu_custom_call.1} parent=15 // pred_fallthru
          _
      $region16: #{tpu_custom_call.1} parent=5 // pred_fallthru
        _
      %p247 = scmp.le.s32.totalorder 1, %s18
      %p248 = scmp.lt.s32.totalorder %s18, 3
      %p249 = pnand %p247, %p248
      %p250 = pneg %p249
      // Predicated region
      $region25: #{tpu_custom_call.1} parent=5 // pred_check
        _
      $region26: #{tpu_custom_call.1} parent=5 // pred_check_branch
        %252 = sbr.rel (%p249) target = $region28
      $region27: #{tpu_custom_call.1} parent=5 // pred_region
        %s253 = ssub.s32 %s18, 1
        %s254 = sand.u32 %s45, 1
        %s255 = scalar_lea.sflag [#allocation4], %s254
        %s256 = sand.u32 %s45, 1
        %s257 = smul.addr %s256, 8
        %s258 = scalar_lea.vmem [#allocation3], %s257
        // Predicated region
        $region29: #{tpu_custom_call.1} parent=27 // pred_check
          %p259 = pneg %p58
        $region30: #{tpu_custom_call.1} parent=27 // pred_check_branch
          %261 = sbr.rel (%p259) target = $region32
        $region31: #{tpu_custom_call.1} parent=27 // pred_region
          %262 = dma.done %s255, 128
        $region32: #{tpu_custom_call.1} parent=27 // pred_fallthru
          _
        %s263 = sand.u32 %s73, 1
        %s264 = scalar_lea.sflag [#allocation6], %s263
        %s265 = sand.u32 %s73, 1
        %s266 = smul.addr %s265, 8
        %s267 = scalar_lea.vmem [#allocation5], %s266
        // Predicated region
        $region33: #{tpu_custom_call.1} parent=27 // pred_check
          %p268 = pneg %p86
        $region34: #{tpu_custom_call.1} parent=27 // pred_check_branch
          %270 = sbr.rel (%p268) target = $region36
        $region35: #{tpu_custom_call.1} parent=27 // pred_region
          %271 = dma.done %s264, 128
        $region36: #{tpu_custom_call.1} parent=27 // pred_fallthru
          _
        %s272 = sand.u32 %s45, 1
        %s273 = scalar_lea.sflag [#allocation4], %s272
        %s274 = sand.u32 %s45, 1
        %s275 = smul.addr %s274, 8
        %s276 = scalar_lea.vmem [#allocation3], %s275
        %p277 = pneg %p58
        %p278 = pneg %p55
        %s279 = sand.u32 %s73, 1
        %s280 = scalar_lea.sflag [#allocation6], %s279
        %s281 = sand.u32 %s73, 1
        %s282 = smul.addr %s281, 8
        %s283 = scalar_lea.vmem [#allocation5], %s282
        %p284 = pneg %p86
        %p285 = pneg %p83
        %p286 = pneg %p112
        %p287 = pneg %p109
        %p288 = scmp.lt.s32.totalorder %s27, 1
        %s289 = scalar_select %p288, %s27, 1
        %s290 = scalar_lea.vmem %s2, %s289
        %p291 = pneg %p138
        %p292 = pneg %p135
        %p293 = scmp.lt.s32.totalorder %s27, 1
        %s294 = scalar_select %p293, %s27, 1
        %s295 = scalar_lea.vmem %s3, %s294
        %p296 = pneg %p164
        %p297 = pneg %p161
        %p298 = scmp.lt.s32.totalorder %s27, 1
        %s299 = scalar_select %p298, %s27, 1
        %s300 = scalar_lea.vmem %s4, %s299
        %p301 = pneg %p190
        %p302 = pneg %p187
        %p303 = scmp.lt.s32.totalorder %s27, 1
        %s304 = scalar_select %p303, %s27, 1
        %s305 = scalar_lea.vmem %s5, %s304
        %p306 = scmp.lt.s32.totalorder %s27, 1
        %s307 = scalar_select %p306, %s27, 1
        %s308 = scalar_lea.vmem %s2, %s307
        %p309 = scmp.lt.s32.totalorder %s27, 1
        %s310 = scalar_select %p309, %s27, 1
        %s311 = scalar_lea.vmem %s3, %s310
        %p312 = scmp.lt.s32.totalorder %s27, 1
        %s313 = scalar_select %p312, %s27, 1
        %s314 = scalar_lea.vmem %s4, %s313
        %p315 = scmp.lt.s32.totalorder %s27, 1
        %s316 = scalar_select %p315, %s27, 1
        %s317 = scalar_lea.vmem %s5, %s316
        %p318 = scmp.eq.s32.totalorder %s28, 0
        // Predicated region
        $region37: #{tpu_custom_call.1} parent=27 // pred_check
          %p319 = pneg %p318
        $region38: #{tpu_custom_call.1} parent=27 // pred_check_branch
          %321 = sbr.rel (%p319) target = $region40
        $region39: #{tpu_custom_call.1} parent=27 // pred_region
          %322 = vst [vmem:[#allocation2] sm:$0xff] 0.0
          %323 = vst [vmem:[#allocation2 + $0x8] sm:$0xff] 0.0
          %324 = vst [vmem:[#allocation2 + $0x10] sm:$0xff] 0.0
          %325 = vst [vmem:[#allocation2 + $0x18] sm:$0xff] 0.0
        $region40: #{tpu_custom_call.1} parent=27 // pred_fallthru
          _
        %v326 = vld [vmem:[%s258] sm:$0xff]
        %v327 = vld [vmem:[%s267] sm:$0xff]
        %v328 = vlog2.pop %v326
        %v329 = vmul.f32 %v328, 0.6931472
        %v330 = vmax.f32 %v329, -100.0
        %v331 = vsub.f32 0.0, %v326
        %v332 = vadd.f32 %v331, 1.0
        %v333 = vlog2.pop %v332
        %v334 = vmul.f32 %v333, 0.6931472
        %v335 = vmul.f32 -0.5, %v331
        %v336 = vadd.f32 %v335, 1.0
        %v337 = vmul.f32 %v336, %v331
        %v338 = vand.u32 2147483647, %v331
        %vm339 = vcmp.lt.f32.partialorder %v338, 0.0004427343
        %v340 = vsel %vm339, %v337, %v334
        %v341 = vmax.f32 %v340, -100.0
        %v342 = vsub.f32 %v330, %v341
        %v343 = vmul.f32 %v327, %v342
        %v344 = vadd.f32 %v343, %v341
        %v345 = vsub.f32 0.0, %v344
        %v346 = vld [vmem:[#allocation2] sm:$0xff]
        %v347 = vadd.f32 %v345, 0.0
        %v348 = vadd.f32 %v346, %v347
        %349 = vst [vmem:[#allocation2] sm:$0xff] %v348
        %s350 = scalar_lea.vmem [#allocation2], 8
        %v351 = vld [vmem:[%s350] sm:$0xff]
        %v352 = vmul.f32 %v326, %v327
        %v353 = vadd.f32 %v352, 0.0
        %v354 = vadd.f32 %v351, %v353
        %355 = vst [vmem:[%s350] sm:$0xff] %v354
        %s356 = scalar_lea.vmem [#allocation2], 16
        %v357 = vld [vmem:[%s356] sm:$0xff]
        %v358 = vadd.f32 %v326, 0.0
        %v359 = vadd.f32 %v357, %v358
        %360 = vst [vmem:[%s356] sm:$0xff] %v359
        %s361 = scalar_lea.vmem [#allocation2], 24
        %v362 = vld [vmem:[%s361] sm:$0xff]
        %v363 = vadd.f32 %v327, 0.0
        %v364 = vadd.f32 %v362, %v363
        %365 = vst [vmem:[%s361] sm:$0xff] %v364
        // Predicated region
        $region41: #{tpu_custom_call.1} parent=27 // pred_check
          %p366 = pneg %p318
        $region42: #{tpu_custom_call.1} parent=27 // pred_check_branch
          %368 = sbr.rel (%p366) target = $region44
        $region43: #{tpu_custom_call.1} parent=27 // pred_region
          %v369 = vld [vmem:[#allocation2] sm:$0xff]
          %370 = vadd.xlane.f32.xlu0 %v369
          %v371 = vpop.xlane.xlu0 %370
          %v372 = vrot.slane %v371, 4
          %v373 = vadd.f32 %v371, %v372
          %v374 = vrot.slane %v373, 2
          %v375 = vadd.f32 %v373, %v374
          %v376 = vrot.slane %v375, 1
          %v377 = vadd.f32 %v375, %v376
          %vm378 = vcmask 0
          %379 = vst.msk [vmem:[%s308] sm:$0x1] %vm378, %v377
          %v380 = vld [vmem:[%s350] sm:$0xff]
          %381 = vadd.xlane.f32.xlu0 %v380
          %v382 = vpop.xlane.xlu0 %381
          %v383 = vrot.slane %v382, 4
          %v384 = vadd.f32 %v382, %v383
          %v385 = vrot.slane %v384, 2
          %v386 = vadd.f32 %v384, %v385
          %v387 = vrot.slane %v386, 1
          %v388 = vadd.f32 %v386, %v387
          %389 = vst.msk [vmem:[%s311] sm:$0x1] %vm378, %v388
          %v390 = vld [vmem:[%s356] sm:$0xff]
          %391 = vadd.xlane.f32.xlu0 %v390
          %v392 = vpop.xlane.xlu0 %391
          %v393 = vrot.slane %v392, 4
          %v394 = vadd.f32 %v392, %v393
          %v395 = vrot.slane %v394, 2
          %v396 = vadd.f32 %v394, %v395
          %v397 = vrot.slane %v396, 1
          %v398 = vadd.f32 %v396, %v397
          %399 = vst.msk [vmem:[%s314] sm:$0x1] %vm378, %v398
          %v400 = vld [vmem:[%s361] sm:$0xff]
          %401 = vadd.xlane.f32.xlu0 %v400
          %v402 = vpop.xlane.xlu0 %401
          %v403 = vrot.slane %v402, 4
          %v404 = vadd.f32 %v402, %v403
          %v405 = vrot.slane %v404, 2
          %v406 = vadd.f32 %v404, %v405
          %v407 = vrot.slane %v406, 1
          %v408 = vadd.f32 %v406, %v407
          %409 = vst.msk [vmem:[%s317] sm:$0x1] %vm378, %v408
        $region44: #{tpu_custom_call.1} parent=27 // pred_fallthru
          _
        %p410 = scmp.lt.s32.totalorder %s27, 1
        %s411 = scalar_select %p410, %s27, 1
        %s412 = scalar_lea.vmem %s2, %s411
        %p413 = scmp.lt.s32.totalorder %s27, 1
        %s414 = scalar_select %p413, %s27, 1
        %s415 = scalar_lea.vmem %s3, %s414
        %p416 = scmp.lt.s32.totalorder %s27, 1
        %s417 = scalar_select %p416, %s27, 1
        %s418 = scalar_lea.vmem %s4, %s417
        %p419 = scmp.lt.s32.totalorder %s27, 1
        %s420 = scalar_select %p419, %s27, 1
        %s421 = scalar_lea.vmem %s5, %s420
        // Predicated region
        $region45: #{tpu_custom_call.1} parent=27 // pred_check
          %p422 = pneg %p109
        $region46: #{tpu_custom_call.1} parent=27 // pred_check_branch
          %424 = sbr.rel (%p422) target = $region48
        $region47: #{tpu_custom_call.1} parent=27 // pred_region
          _
        $region48: #{tpu_custom_call.1} parent=27 // pred_fallthru
          _
        // Predicated region
        $region49: #{tpu_custom_call.1} parent=27 // pred_check
          %p425 = pneg %p135
        $region50: #{tpu_custom_call.1} parent=27 // pred_check_branch
          %427 = sbr.rel (%p425) target = $region52
        $region51: #{tpu_custom_call.1} parent=27 // pred_region
          _
        $region52: #{tpu_custom_call.1} parent=27 // pred_fallthru
          _
        // Predicated region
        $region53: #{tpu_custom_call.1} parent=27 // pred_check
          %p428 = pneg %p161
        $region54: #{tpu_custom_call.1} parent=27 // pred_check_branch
          %430 = sbr.rel (%p428) target = $region56
        $region55: #{tpu_custom_call.1} parent=27 // pred_region
          _
        $region56: #{tpu_custom_call.1} parent=27 // pred_fallthru
          _
        // Predicated region
        $region57: #{tpu_custom_call.1} parent=27 // pred_check
          %p431 = pneg %p187
        $region58: #{tpu_custom_call.1} parent=27 // pred_check_branch
          %433 = sbr.rel (%p431) target = $region60
        $region59: #{tpu_custom_call.1} parent=27 // pred_region
          _
        $region60: #{tpu_custom_call.1} parent=27 // pred_fallthru
          _
      $region28: #{tpu_custom_call.1} parent=5 // pred_fallthru
        _
      %p434 = scmp.le.s32.totalorder 2, %s18
      // Predicated region
      $region61: #{tpu_custom_call.1} parent=5 // pred_check
        %p435 = pneg %p434
      $region62: #{tpu_custom_call.1} parent=5 // pred_check_branch
        %437 = sbr.rel (%p435) target = $region64
      $region63: #{tpu_custom_call.1} parent=5 // pred_region
        %s438 = ssub.s32 %s18, 2
        // Predicated region
        $region65: #{tpu_custom_call.1} parent=63 // pred_check
          %p439 = pneg %p115
        $region66: #{tpu_custom_call.1} parent=63 // pred_check_branch
          %441 = sbr.rel (%p439) target = $region68
        $region67: #{tpu_custom_call.1} parent=63 // pred_region
          %p442 = scmp.lt.s32.totalorder %s29, 1
          %s443 = scalar_select %p442, %s29, 1
          %s444 = scalar_lea.vmem %s2, %s443
        $region68: #{tpu_custom_call.1} parent=63 // pred_fallthru
          _
        // Predicated region
        $region69: #{tpu_custom_call.1} parent=63 // pred_check
          %p445 = pneg %p141
        $region70: #{tpu_custom_call.1} parent=63 // pred_check_branch
          %447 = sbr.rel (%p445) target = $region72
        $region71: #{tpu_custom_call.1} parent=63 // pred_region
          %p448 = scmp.lt.s32.totalorder %s29, 1
          %s449 = scalar_select %p448, %s29, 1
          %s450 = scalar_lea.vmem %s3, %s449
        $region72: #{tpu_custom_call.1} parent=63 // pred_fallthru
          _
        // Predicated region
        $region73: #{tpu_custom_call.1} parent=63 // pred_check
          %p451 = pneg %p167
        $region74: #{tpu_custom_call.1} parent=63 // pred_check_branch
          %453 = sbr.rel (%p451) target = $region76
        $region75: #{tpu_custom_call.1} parent=63 // pred_region
          %p454 = scmp.lt.s32.totalorder %s29, 1
          %s455 = scalar_select %p454, %s29, 1
          %s456 = scalar_lea.vmem %s4, %s455
        $region76: #{tpu_custom_call.1} parent=63 // pred_fallthru
          _
        // Predicated region
        $region77: #{tpu_custom_call.1} parent=63 // pred_check
          %p457 = pneg %p193
        $region78: #{tpu_custom_call.1} parent=63 // pred_check_branch
          %459 = sbr.rel (%p457) target = $region80
        $region79: #{tpu_custom_call.1} parent=63 // pred_region
          %p460 = scmp.lt.s32.totalorder %s29, 1
          %s461 = scalar_select %p460, %s29, 1
          %s462 = scalar_lea.vmem %s5, %s461
        $region80: #{tpu_custom_call.1} parent=63 // pred_fallthru
          _
      $region64: #{tpu_custom_call.1} parent=5 // pred_fallthru
        _
    $region6: #{tpu_custom_call.1} parent=1 // loop_footer
      %s22 = sadd.s32 1, %s18
    $region7: #{tpu_custom_call.1} parent=1 // loop_footer_branch
      %17 = sbr.rel target = $region3
    $region8: #{tpu_custom_call.1} parent=1 // loop_exit
      _
    %463 = vsyncpa [#allocation4], 1
    %s464 = scalar_lea.sflag [#allocation4], 1
    %465 = vsyncpa %s464, 1
    %466 = vsyncpa [#allocation6], 1
    %s467 = scalar_lea.sflag [#allocation6], 1
    %468 = vsyncpa %s467, 1

</llo_original>
